<compile_context>
chip_gen: v5e
topology: v5e:2x2
jax: 0.10.0
libtpu: 0.0.40
codegen_flags: <defaults>
</compile_context>

<pallas_src>
import jax
import jax.numpy as jnp
from jax.experimental import pallas as pl
from jax.experimental.pallas import tpu as pltpu

LANE = 128      # vreg lane width
SUBLANE = 8     # vreg sublane width


def autoencoder_kernel(x_ref,
                       w1_ref, b1_ref,   # encoder Linear(input_dim -> hidden)
                       w2_ref, b2_ref,   # encoder Linear(hidden -> latent_dim)
                       w3_ref, b3_ref,   # decoder Linear(latent_dim -> hidden)
                       w4_ref, b4_ref,   # decoder Linear(hidden -> input_dim)
                       recon_ref, latent_ref):
    x = x_ref[...]

    # ---- encoder ----
    h1 = jnp.dot(x, w1_ref[...], preferred_element_type=jnp.float32) + b1_ref[...]
    h1 = jnp.maximum(h1, 0.0)                                   # ReLU
    latent = jnp.dot(h1, w2_ref[...], preferred_element_type=jnp.float32) + b2_ref[...]

    # ---- decoder ----
    h2 = jnp.dot(latent, w3_ref[...], preferred_element_type=jnp.float32) + b3_ref[...]
    h2 = jnp.maximum(h2, 0.0)                                   # ReLU
    recon = jnp.dot(h2, w4_ref[...], preferred_element_type=jnp.float32) + b4_ref[...]

    recon_ref[...] = recon.astype(recon_ref.dtype)
    latent_ref[...] = latent.astype(latent_ref.dtype)


def _round_up(n, m):
    return pl.cdiv(n, m) * m


def _pad2(a, rows, cols):
    r, c = a.shape
    return jnp.pad(a, ((0, rows - r), (0, cols - c)))


def numeric_autoencoder_forward(x, params, tile_b=1024):
    """x: [B, input_dim] float32.  params: dict of w1,b1,w2,b2,w3,b3,w4,b4.

    Weights are [in_features, out_features]; biases are [1, out_features].
    Returns (reconstruction [B, input_dim], latent [B, latent_dim]).
    """
    B, input_dim = x.shape
    hidden = params["w1"].shape[1]
    latent_dim = params["w2"].shape[1]

    # Lane-dense (128-padded) feature dims.
    d_in = _round_up(input_dim, LANE)
    d_h = _round_up(hidden, LANE)
    d_lat = _round_up(latent_dim, LANE)

    # Batch tile: biggest tile up to `tile_b`, multiple of the 8-row sublane.
    tile = min(tile_b, _round_up(B, SUBLANE))
    b_pad = _round_up(B, tile)

    # Zero padding keeps the math exact (see header comment).
    x_p = jnp.pad(x, ((0, b_pad - B), (0, d_in - input_dim)))
    w1 = _pad2(params["w1"], d_in, d_h)
    b1 = _pad2(params["b1"], 1, d_h)
    w2 = _pad2(params["w2"], d_h, d_lat)
    b2 = _pad2(params["b2"], 1, d_lat)
    w3 = _pad2(params["w3"], d_lat, d_h)
    b3 = _pad2(params["b3"], 1, d_h)
    w4 = _pad2(params["w4"], d_h, d_in)
    b4 = _pad2(params["b4"], 1, d_in)

    grid = (b_pad // tile,)

    # Batch-tiled activations; weights/biases resident across all grid steps.
    tiled = lambda feat: pl.BlockSpec((tile, feat), lambda i: (i, 0))
    resident = lambda shape: pl.BlockSpec(shape, lambda i: (0, 0))

    in_specs = [
        tiled(d_in),
        resident(w1.shape), resident(b1.shape),
        resident(w2.shape), resident(b2.shape),
        resident(w3.shape), resident(b3.shape),
        resident(w4.shape), resident(b4.shape),
    ]
    out_specs = (tiled(d_in), tiled(d_lat))
    out_shape = (
        jax.ShapeDtypeStruct((b_pad, d_in), jnp.float32),   # reconstruction (padded)
        jax.ShapeDtypeStruct((b_pad, d_lat), jnp.float32),  # latent (padded)
    )

    recon_p, latent_p = pl.pallas_call(
        autoencoder_kernel,
        grid=grid,
        in_specs=in_specs,
        out_specs=out_specs,
        out_shape=out_shape,
        compiler_params=pltpu.CompilerParams(
            dimension_semantics=("parallel",),   # shard batch across TCs on v7x
        ),
    )(x_p, w1, b1, w2, b2, w3, b3, w4, b4)

    return recon_p[:B, :input_dim], latent_p[:B, :latent_dim]


def init_params(key, input_dim, latent_dim, hidden=64):
    """Deterministic init (uniform like PyTorch's default Linear init)."""
    ks = jax.random.split(key, 8)

    def linear(kw, kb, fan_in, fan_out):
        bound = 1.0 / jnp.sqrt(fan_in)
        w = jax.random.uniform(kw, (fan_in, fan_out), jnp.float32, -bound, bound)
        b = jax.random.uniform(kb, (1, fan_out), jnp.float32, -bound, bound)
        return w, b

    w1, b1 = linear(ks[0], ks[1], input_dim, hidden)
    w2, b2 = linear(ks[2], ks[3], hidden, latent_dim)
    w3, b3 = linear(ks[4], ks[5], latent_dim, hidden)
    w4, b4 = linear(ks[6], ks[7], hidden, input_dim)
    return dict(w1=w1, b1=b1, w2=w2, b2=b2, w3=w3, b3=b3, w4=w4, b4=b4)


def _reference(x, p):
    h1 = jnp.maximum(x @ p["w1"] + p["b1"], 0.0)
    lat = h1 @ p["w2"] + p["b2"]
    h2 = jnp.maximum(lat @ p["w3"] + p["b3"], 0.0)
    rec = h2 @ p["w4"] + p["b4"]
    return rec, lat


if __name__ == "__main__":
    key = jax.random.PRNGKey(0)
    k_x, k_x2, k_p = jax.random.split(key, 3)

    input_dim, latent_dim = 16, 8
    params = init_params(k_p, input_dim, latent_dim)

    # Small case (matches the toy PyTorch usage).
    B = 8
    x = jax.random.normal(k_x, (B, input_dim), jnp.float32)
    recon, latent = numeric_autoencoder_forward(x, params)
    jax.block_until_ready((recon, latent))

    rec_ref, lat_ref = _reference(x, params)
    assert recon.shape == (B, input_dim) and latent.shape == (B, latent_dim)
    assert jnp.allclose(latent, lat_ref, atol=1e-5)
    assert jnp.allclose(recon, rec_ref, atol=1e-5)

    # Multi-tile, ragged-batch case (exercises grid > 1 + batch padding).
    B2 = 300
    x2 = jax.random.normal(k_x2, (B2, input_dim), jnp.float32)
    recon2, latent2 = numeric_autoencoder_forward(x2, params, tile_b=128)
    jax.block_until_ready((recon2, latent2))

    rec_ref2, lat_ref2 = _reference(x2, params)
    assert recon2.shape == (B2, input_dim) and latent2.shape == (B2, latent_dim)
    assert jnp.allclose(latent2, lat_ref2, atol=1e-5)
    assert jnp.allclose(recon2, rec_ref2, atol=1e-5)

    print("KERNEL_OK")
</pallas_src>

<mosaic_0001>
module attributes {stable_mosaic.version = 11 : i64} {
  func.func @autoencoder_kernel(%arg0: i32, %arg1: memref<8x128xf32, #tpu.memory_space<vmem>>, %arg2: memref<128x128xf32, #tpu.memory_space<vmem>>, %arg3: memref<1x128xf32, #tpu.memory_space<vmem>>, %arg4: memref<128x128xf32, #tpu.memory_space<vmem>>, %arg5: memref<1x128xf32, #tpu.memory_space<vmem>>, %arg6: memref<128x128xf32, #tpu.memory_space<vmem>>, %arg7: memref<1x128xf32, #tpu.memory_space<vmem>>, %arg8: memref<128x128xf32, #tpu.memory_space<vmem>>, %arg9: memref<1x128xf32, #tpu.memory_space<vmem>>, %arg10: memref<8x128xf32, #tpu.memory_space<vmem>>, %arg11: memref<8x128xf32, #tpu.memory_space<vmem>>) attributes {dimension_semantics = [#tpu.dimension_semantics<parallel>], iteration_bounds = array<i64: 1>, scalar_prefetch = 0 : i64, scratch_operands = 0 : i64, tpu.core_type = #tpu.core_type<tc>, window_params = [{transform_indices = @transform_0, window_bounds = array<i64: 8, 128>}, {pipeline_mode = #tpu.pipeline_mode<synchronous>, transform_indices = @transform_1, window_bounds = array<i64: 128, 128>}, {pipeline_mode = #tpu.pipeline_mode<synchronous>, transform_indices = @transform_2, window_bounds = array<i64: 1, 128>}, {pipeline_mode = #tpu.pipeline_mode<synchronous>, transform_indices = @transform_3, window_bounds = array<i64: 128, 128>}, {pipeline_mode = #tpu.pipeline_mode<synchronous>, transform_indices = @transform_4, window_bounds = array<i64: 1, 128>}, {pipeline_mode = #tpu.pipeline_mode<synchronous>, transform_indices = @transform_5, window_bounds = array<i64: 128, 128>}, {pipeline_mode = #tpu.pipeline_mode<synchronous>, transform_indices = @transform_6, window_bounds = array<i64: 1, 128>}, {pipeline_mode = #tpu.pipeline_mode<synchronous>, transform_indices = @transform_7, window_bounds = array<i64: 128, 128>}, {pipeline_mode = #tpu.pipeline_mode<synchronous>, transform_indices = @transform_8, window_bounds = array<i64: 1, 128>}, {transform_indices = @transform_9, window_bounds = array<i64: 8, 128>}, {transform_indices = @transform_10, window_bounds = array<i64: 8, 128>}]} {
    %c0 = arith.constant 0 : index
    %c0_0 = arith.constant 0 : index
    %0 = vector.load %arg1[%c0, %c0_0] : memref<8x128xf32, #tpu.memory_space<vmem>>, vector<8x128xf32>
    %c0_1 = arith.constant 0 : index
    %c0_2 = arith.constant 0 : index
    %1 = vector.load %arg2[%c0_1, %c0_2] : memref<128x128xf32, #tpu.memory_space<vmem>>, vector<128x128xf32>
    %cst = arith.constant dense<0.000000e+00> : vector<8x128xf32>
    %2 = tpu.matmul %0, %1, %cst {dimension_numbers = #tpu.dot_dimension_numbers<[1], [0], [0], [1], [0, 0, 1, 1], [], []>} : vector<8x128xf32>, vector<128x128xf32>, vector<8x128xf32> -> vector<8x128xf32>
    %c0_3 = arith.constant 0 : index
    %c0_4 = arith.constant 0 : index
    %3 = vector.load %arg3[%c0_3, %c0_4] : memref<1x128xf32, #tpu.memory_space<vmem>>, vector<1x128xf32>
    %4 = vector.broadcast %3 : vector<1x128xf32> to vector<8x128xf32>
    %5 = arith.addf %2, %4 : vector<8x128xf32>
    %cst_5 = arith.constant 0.000000e+00 : f32
    %6 = vector.broadcast %cst_5 : f32 to vector<8x128xf32>
    %7 = arith.maximumf %5, %6 : vector<8x128xf32>
    %c0_6 = arith.constant 0 : index
    %c0_7 = arith.constant 0 : index
    %8 = vector.load %arg4[%c0_6, %c0_7] : memref<128x128xf32, #tpu.memory_space<vmem>>, vector<128x128xf32>
    %cst_8 = arith.constant dense<0.000000e+00> : vector<8x128xf32>
    %9 = tpu.matmul %7, %8, %cst_8 {dimension_numbers = #tpu.dot_dimension_numbers<[1], [0], [0], [1], [0, 0, 1, 1], [], []>} : vector<8x128xf32>, vector<128x128xf32>, vector<8x128xf32> -> vector<8x128xf32>
    %c0_9 = arith.constant 0 : index
    %c0_10 = arith.constant 0 : index
    %10 = vector.load %arg5[%c0_9, %c0_10] : memref<1x128xf32, #tpu.memory_space<vmem>>, vector<1x128xf32>
    %11 = vector.broadcast %10 : vector<1x128xf32> to vector<8x128xf32>
    %12 = arith.addf %9, %11 : vector<8x128xf32>
    %c0_11 = arith.constant 0 : index
    %c0_12 = arith.constant 0 : index
    %13 = vector.load %arg6[%c0_11, %c0_12] : memref<128x128xf32, #tpu.memory_space<vmem>>, vector<128x128xf32>
    %cst_13 = arith.constant dense<0.000000e+00> : vector<8x128xf32>
    %14 = tpu.matmul %12, %13, %cst_13 {dimension_numbers = #tpu.dot_dimension_numbers<[1], [0], [0], [1], [0, 0, 1, 1], [], []>} : vector<8x128xf32>, vector<128x128xf32>, vector<8x128xf32> -> vector<8x128xf32>
    %c0_14 = arith.constant 0 : index
    %c0_15 = arith.constant 0 : index
    %15 = vector.load %arg7[%c0_14, %c0_15] : memref<1x128xf32, #tpu.memory_space<vmem>>, vector<1x128xf32>
    %16 = vector.broadcast %15 : vector<1x128xf32> to vector<8x128xf32>
    %17 = arith.addf %14, %16 : vector<8x128xf32>
    %cst_16 = arith.constant 0.000000e+00 : f32
    %18 = vector.broadcast %cst_16 : f32 to vector<8x128xf32>
    %19 = arith.maximumf %17, %18 : vector<8x128xf32>
    %c0_17 = arith.constant 0 : index
    %c0_18 = arith.constant 0 : index
    %20 = vector.load %arg8[%c0_17, %c0_18] : memref<128x128xf32, #tpu.memory_space<vmem>>, vector<128x128xf32>
    %cst_19 = arith.constant dense<0.000000e+00> : vector<8x128xf32>
    %21 = tpu.matmul %19, %20, %cst_19 {dimension_numbers = #tpu.dot_dimension_numbers<[1], [0], [0], [1], [0, 0, 1, 1], [], []>} : vector<8x128xf32>, vector<128x128xf32>, vector<8x128xf32> -> vector<8x128xf32>
    %c0_20 = arith.constant 0 : index
    %c0_21 = arith.constant 0 : index
    %22 = vector.load %arg9[%c0_20, %c0_21] : memref<1x128xf32, #tpu.memory_space<vmem>>, vector<1x128xf32>
    %23 = vector.broadcast %22 : vector<1x128xf32> to vector<8x128xf32>
    %24 = arith.addf %21, %23 : vector<8x128xf32>
    %c0_22 = arith.constant 0 : index
    %c0_23 = arith.constant 0 : index
    %25 = vector.load %arg10[%c0_22, %c0_23] : memref<8x128xf32, #tpu.memory_space<vmem>>, vector<8x128xf32>
    tpu.vector_store %arg10[%c0_22, %c0_23], %24 {strides = array<i32>} : memref<8x128xf32, #tpu.memory_space<vmem>>, vector<8x128xf32>,
    %c0_24 = arith.constant 0 : index
    %c0_25 = arith.constant 0 : index
    %26 = vector.load %arg11[%c0_24, %c0_25] : memref<8x128xf32, #tpu.memory_space<vmem>>, vector<8x128xf32>
    tpu.vector_store %arg11[%c0_24, %c0_25], %12 {strides = array<i32>} : memref<8x128xf32, #tpu.memory_space<vmem>>, vector<8x128xf32>,
    return
  }
  func.func @transform_0(%arg0: i32) -> (i32, i32) {
    %c0_i32 = arith.constant 0 : i32
    %c0_i32_0 = arith.constant 0 : i32
    return %arg0, %c0_i32 : i32, i32
  }
  func.func @transform_1(%arg0: i32) -> (i32, i32) {
    %c0_i32 = arith.constant 0 : i32
    %c0_i32_0 = arith.constant 0 : i32
    %c0_i32_1 = arith.constant 0 : i32
    return %c0_i32, %c0_i32_0 : i32, i32
  }
  func.func @transform_2(%arg0: i32) -> (i32, i32) {
    %c0_i32 = arith.constant 0 : i32
    %c0_i32_0 = arith.constant 0 : i32
    %c0_i32_1 = arith.constant 0 : i32
    return %c0_i32, %c0_i32_0 : i32, i32
  }
  func.func @transform_3(%arg0: i32) -> (i32, i32) {
    %c0_i32 = arith.constant 0 : i32
    %c0_i32_0 = arith.constant 0 : i32
    %c0_i32_1 = arith.constant 0 : i32
    return %c0_i32, %c0_i32_0 : i32, i32
  }
  func.func @transform_4(%arg0: i32) -> (i32, i32) {
    %c0_i32 = arith.constant 0 : i32
    %c0_i32_0 = arith.constant 0 : i32
    %c0_i32_1 = arith.constant 0 : i32
    return %c0_i32, %c0_i32_0 : i32, i32
  }
  func.func @transform_5(%arg0: i32) -> (i32, i32) {
    %c0_i32 = arith.constant 0 : i32
    %c0_i32_0 = arith.constant 0 : i32
    %c0_i32_1 = arith.constant 0 : i32
    return %c0_i32, %c0_i32_0 : i32, i32
  }
  func.func @transform_6(%arg0: i32) -> (i32, i32) {
    %c0_i32 = arith.constant 0 : i32
    %c0_i32_0 = arith.constant 0 : i32
    %c0_i32_1 = arith.constant 0 : i32
    return %c0_i32, %c0_i32_0 : i32, i32
  }
  func.func @transform_7(%arg0: i32) -> (i32, i32) {
    %c0_i32 = arith.constant 0 : i32
    %c0_i32_0 = arith.constant 0 : i32
    %c0_i32_1 = arith.constant 0 : i32
    return %c0_i32, %c0_i32_0 : i32, i32
  }
  func.func @transform_8(%arg0: i32) -> (i32, i32) {
    %c0_i32 = arith.constant 0 : i32
    %c0_i32_0 = arith.constant 0 : i32
    %c0_i32_1 = arith.constant 0 : i32
    return %c0_i32, %c0_i32_0 : i32, i32
  }
  func.func @transform_9(%arg0: i32) -> (i32, i32) {
    %c0_i32 = arith.constant 0 : i32
    %c0_i32_0 = arith.constant 0 : i32
    return %arg0, %c0_i32 : i32, i32
  }
  func.func @transform_10(%arg0: i32) -> (i32, i32) {
    %c0_i32 = arith.constant 0 : i32
    %c0_i32_0 = arith.constant 0 : i32
    return %arg0, %c0_i32 : i32, i32
  }
}

</mosaic_0001>

<llo_original>
// kernel: tpu_custom_call.1
$region0: #{tpu_custom_call.1}
  #allocation0 [shape = 'u32[]', space=smem, size = 0x4, offset = 0x4, fixed_abs, tag = 'smem constant byte address 0x4 - core index']
  #allocation1 [shape = 'u32[72,128]{1,0:T(1,128)}', space=vmem, size = 0x9000, scoped, tag = 'internal scratch']
  %s0 = inlined_call_operand.hbm [shape: f32[8,128], index: 0, kind: input, shape index: {}]
  %s1 = inlined_call_operand.hbm [shape: f32[128,128], index: 1, kind: input, shape index: {}]
  %s2 = inlined_call_operand.vmem [shape: f32[1,128], index: 2, kind: input, shape index: {}]
  %s3 = inlined_call_operand.hbm [shape: f32[128,128], index: 3, kind: input, shape index: {}]
  %s4 = inlined_call_operand.vmem [shape: f32[1,128], index: 4, kind: input, shape index: {}]
  %s5 = inlined_call_operand.hbm [shape: f32[128,128], index: 5, kind: input, shape index: {}]
  %s6 = inlined_call_operand.vmem [shape: f32[1,128], index: 6, kind: input, shape index: {}]
  %s7 = inlined_call_operand.hbm [shape: f32[128,128], index: 7, kind: input, shape index: {}]
  %s8 = inlined_call_operand.vmem [shape: f32[1,128], index: 8, kind: input, shape index: {}]
  %s9 = inlined_call_operand.hbm [shape: f32[8,128], index: 9, kind: output, shape index: {0}]
  %s10 = inlined_call_operand.hbm [shape: f32[8,128], index: 10, kind: output, shape index: {1}]
  %11 = xla_tuple %s9, %s10
  %s12 = sld [smem:[#allocation0]]
  $region74: #{tpu_custom_call.1} parent=0
    _
  %s14 = ssub.s32 1, %s12
  %s15 = scalar_select 0, %s14, %s12
  $region1: #{tpu_custom_call.1} parent=0
    #allocation2 [shape = 'u8[4096]{0}', space=vmem, size = 0x1000, scoped, tag = 'input window, operand 0, single buffered']
    #allocation3 [shape = 's32[1]{0}', space=sflag, size = 0x4, scoped, tag = 'scoped memory for tpu_custom_call.1']
    #allocation4 [shape = 's32[1]{0}', space=sflag, size = 0x4, scoped, tag = 'scoped memory for tpu_custom_call.1']
    #allocation5 [shape = 'u8[65536]{0}', space=vmem, size = 0x10000, scoped, tag = 'input window, operand 1, single buffered']
    #allocation6 [shape = 's32[1]{0}', space=sflag, size = 0x4, scoped, tag = 'scoped memory for tpu_custom_call.1']
    #allocation7 [shape = 'u8[65536]{0}', space=vmem, size = 0x10000, scoped, tag = 'input window, operand 3, single buffered']
    #allocation8 [shape = 'u8[65536]{0}', space=vmem, size = 0x10000, scoped, tag = 'input window, operand 5, single buffered']
    #allocation9 [shape = 's32[1]{0}', space=sflag, size = 0x4, scoped, tag = 'scoped memory for tpu_custom_call.1']
    #allocation10 [shape = 'u8[65536]{0}', space=vmem, size = 0x10000, scoped, tag = 'input window, operand 7, single buffered']
    #allocation11 [shape = 'u8[4096]{0}', space=vmem, size = 0x1000, scoped, tag = 'output window, operand 0, single buffered']
    #allocation12 [shape = 'u8[4096]{0}', space=vmem, size = 0x1000, scoped, tag = 'output window, operand 1, single buffered']
    #allocation13 [shape = 's32[1]{0}', space=sflag, size = 0x4, scoped, tag = 'scoped memory for tpu_custom_call.1']
    %16 = vsyncpa [#allocation3], 0
    %17 = vsyncpa [#allocation6], 0
    %18 = vsyncpa [#allocation9], 0
    %19 = vsyncpa [#allocation4], 0
    %20 = vsyncpa [#allocation13], 0
    // Predicated region
    $region2: #{tpu_custom_call.1} parent=1 // pred_check
      _
    $region3: #{tpu_custom_call.1} parent=1 // pred_check_branch
      %22 = sbr.rel (0) target = $region5
    $region4: #{tpu_custom_call.1} parent=1 // pred_region
      %24 = vsyncadd [#allocation3], 0
      %s26 = sshll.u32 %s0, 4
      %s27 = int_to_ptr.hbm [resolvable:$true] %s26
      %s28 = sshll.u32 [#allocation2], 4
      %s29 = int_to_ptr.vmem [resolvable:$true] %s28
      %31 = dma.hbm_to_vmem [thread:$0]  %s27, 128, %s29, [#allocation3]
    $region5: #{tpu_custom_call.1} parent=1 // pred_fallthru
      _
    // Predicated region
    $region6: #{tpu_custom_call.1} parent=1 // pred_check
      _
    $region7: #{tpu_custom_call.1} parent=1 // pred_check_branch
      %33 = sbr.rel (0) target = $region9
    $region8: #{tpu_custom_call.1} parent=1 // pred_region
      %35 = vsyncadd [#allocation6], 0
      %s36 = sshll.u32 %s1, 4
      %s37 = int_to_ptr.hbm [resolvable:$true] %s36
      %s38 = sshll.u32 [#allocation5], 4
      %s39 = int_to_ptr.vmem [resolvable:$true] %s38
      %44 = dma.hbm_to_vmem [thread:$0]  %s37, 2048, %s39, [#allocation6], 128, 128, 8
    $region9: #{tpu_custom_call.1} parent=1 // pred_fallthru
      _
    // Predicated region
    $region10: #{tpu_custom_call.1} parent=1 // pred_check
      _
    $region11: #{tpu_custom_call.1} parent=1 // pred_check_branch
      %46 = sbr.rel (0) target = $region13
    $region12: #{tpu_custom_call.1} parent=1 // pred_region
      _
    $region13: #{tpu_custom_call.1} parent=1 // pred_fallthru
      _
    // Predicated region
    $region14: #{tpu_custom_call.1} parent=1 // pred_check
      _
    $region15: #{tpu_custom_call.1} parent=1 // pred_check_branch
      %48 = sbr.rel (0) target = $region17
    $region16: #{tpu_custom_call.1} parent=1 // pred_region
      %50 = vsyncadd [#allocation6], 0
      %s51 = sshll.u32 %s3, 4
      %s52 = int_to_ptr.hbm [resolvable:$true] %s51
      %s53 = sshll.u32 [#allocation7], 4
      %s54 = int_to_ptr.vmem [resolvable:$true] %s53
      %59 = dma.hbm_to_vmem [thread:$0]  %s52, 2048, %s54, [#allocation6], 128, 128, 8
    $region17: #{tpu_custom_call.1} parent=1 // pred_fallthru
      _
    // Predicated region
    $region18: #{tpu_custom_call.1} parent=1 // pred_check
      _
    $region19: #{tpu_custom_call.1} parent=1 // pred_check_branch
      %61 = sbr.rel (0) target = $region21
    $region20: #{tpu_custom_call.1} parent=1 // pred_region
      _
    $region21: #{tpu_custom_call.1} parent=1 // pred_fallthru
      _
    // Predicated region
    $region22: #{tpu_custom_call.1} parent=1 // pred_check
      _
    $region23: #{tpu_custom_call.1} parent=1 // pred_check_branch
      %63 = sbr.rel (0) target = $region25
    $region24: #{tpu_custom_call.1} parent=1 // pred_region
      %65 = vsyncadd [#allocation9], 0
      %s66 = sshll.u32 %s5, 4
      %s67 = int_to_ptr.hbm [resolvable:$true] %s66
      %s68 = sshll.u32 [#allocation8], 4
      %s69 = int_to_ptr.vmem [resolvable:$true] %s68
      %74 = dma.hbm_to_vmem [thread:$0]  %s67, 2048, %s69, [#allocation9], 128, 128, 8
    $region25: #{tpu_custom_call.1} parent=1 // pred_fallthru
      _
    // Predicated region
    $region26: #{tpu_custom_call.1} parent=1 // pred_check
      _
    $region27: #{tpu_custom_call.1} parent=1 // pred_check_branch
      %76 = sbr.rel (0) target = $region29
    $region28: #{tpu_custom_call.1} parent=1 // pred_region
      _
    $region29: #{tpu_custom_call.1} parent=1 // pred_fallthru
      _
    // Predicated region
    $region30: #{tpu_custom_call.1} parent=1 // pred_check
      _
    $region31: #{tpu_custom_call.1} parent=1 // pred_check_branch
      %78 = sbr.rel (0) target = $region33
    $region32: #{tpu_custom_call.1} parent=1 // pred_region
      %80 = vsyncadd [#allocation9], 0
      %s81 = sshll.u32 %s7, 4
      %s82 = int_to_ptr.hbm [resolvable:$true] %s81
      %s83 = sshll.u32 [#allocation10], 4
      %s84 = int_to_ptr.vmem [resolvable:$true] %s83
      %89 = dma.hbm_to_vmem [thread:$0]  %s82, 2048, %s84, [#allocation9], 128, 128, 8
    $region33: #{tpu_custom_call.1} parent=1 // pred_fallthru
      _
    // Predicated region
    $region34: #{tpu_custom_call.1} parent=1 // pred_check
      _
    $region35: #{tpu_custom_call.1} parent=1 // pred_check_branch
      %91 = sbr.rel (0) target = $region37
    $region36: #{tpu_custom_call.1} parent=1 // pred_region
      _
    $region37: #{tpu_custom_call.1} parent=1 // pred_fallthru
      _
    // Predicated region
    $region38: #{tpu_custom_call.1} parent=1 // pred_check
      _
    $region39: #{tpu_custom_call.1} parent=1 // pred_check_branch
      %93 = sbr.rel (0) target = $region41
    $region40: #{tpu_custom_call.1} parent=1 // pred_region
      %95 = dma.done [#allocation3], 128
    $region41: #{tpu_custom_call.1} parent=1 // pred_fallthru
      _
    // Predicated region
    $region42: #{tpu_custom_call.1} parent=1 // pred_check
      _
    $region43: #{tpu_custom_call.1} parent=1 // pred_check_branch
      %97 = sbr.rel (0) target = $region45
    $region44: #{tpu_custom_call.1} parent=1 // pred_region
      %99 = dma.done [#allocation6], 2048
    $region45: #{tpu_custom_call.1} parent=1 // pred_fallthru
      _
    // Predicated region
    $region46: #{tpu_custom_call.1} parent=1 // pred_check
      _
    $region47: #{tpu_custom_call.1} parent=1 // pred_check_branch
      %101 = sbr.rel (0) target = $region49
    $region48: #{tpu_custom_call.1} parent=1 // pred_region
      %103 = dma.done [#allocation6], 2048
    $region49: #{tpu_custom_call.1} parent=1 // pred_fallthru
      _
    // Predicated region
    $region50: #{tpu_custom_call.1} parent=1 // pred_check
      _
    $region51: #{tpu_custom_call.1} parent=1 // pred_check_branch
      %105 = sbr.rel (0) target = $region53
    $region52: #{tpu_custom_call.1} parent=1 // pred_region
      %107 = dma.done [#allocation9], 2048
    $region53: #{tpu_custom_call.1} parent=1 // pred_fallthru
      _
    // Predicated region
    $region54: #{tpu_custom_call.1} parent=1 // pred_check
      _
    $region55: #{tpu_custom_call.1} parent=1 // pred_check_branch
      %109 = sbr.rel (0) target = $region57
    $region56: #{tpu_custom_call.1} parent=1 // pred_region
      %111 = dma.done [#allocation9], 2048
    $region57: #{tpu_custom_call.1} parent=1 // pred_fallthru
      _
    %v112 = vld [vmem:[#allocation2] sm:$0xff]
    %v113 = vld [vmem:[#allocation5] sm:$0xff]
    %v114 = vld [vmem:[#allocation5 + $0x8] sm:$0xff]
    %v115 = vld [vmem:[#allocation5 + $0x10] sm:$0xff]
    %v116 = vld [vmem:[#allocation5 + $0x18] sm:$0xff]
    %v117 = vld [vmem:[#allocation5 + $0x20] sm:$0xff]
    %v118 = vld [vmem:[#allocation5 + $0x28] sm:$0xff]
    %v119 = vld [vmem:[#allocation5 + $0x30] sm:$0xff]
    %v120 = vld [vmem:[#allocation5 + $0x38] sm:$0xff]
    %v121 = vld [vmem:[#allocation5 + $0x40] sm:$0xff]
    %v122 = vld [vmem:[#allocation5 + $0x48] sm:$0xff]
    %v123 = vld [vmem:[#allocation5 + $0x50] sm:$0xff]
    %v124 = vld [vmem:[#allocation5 + $0x58] sm:$0xff]
    %v125 = vld [vmem:[#allocation5 + $0x60] sm:$0xff]
    %v126 = vld [vmem:[#allocation5 + $0x68] sm:$0xff]
    %v127 = vld [vmem:[#allocation5 + $0x70] sm:$0xff]
    %v128 = vld [vmem:[#allocation5 + $0x78] sm:$0xff]
    %v129 = vld [vmem:[%s2] sm:$0x1]
    %v131 = vperm.slane %v129, 0
    %133 = vmatpush.msra.mxu0 %v128
    %134 = vmatpush.msra.mxu0 %v127
    %135 = vmatpush.msra.mxu0 %v126
    %136 = vmatpush.msra.mxu0 %v125
    %137 = vmatpush.msra.mxu0 %v124
    %138 = vmatpush.msra.mxu0 %v123
    %139 = vmatpush.msra.mxu0 %v122
    %140 = vmatpush.msra.mxu0 %v121
    %141 = vmatpush.msra.mxu0 %v120
    %142 = vmatpush.msra.mxu0 %v119
    %143 = vmatpush.msra.mxu0 %v118
    %144 = vmatpush.msra.mxu0 %v117
    %145 = vmatpush.msra.mxu0 %v116
    %146 = vmatpush.msra.mxu0 %v115
    %147 = vmatpush.msra.mxu0 %v114
    %148 = vmatpush.msra.mxu0 %v113
    %149 = vmatmul.f32.gmra.mxu0 %v112
    %v150 = vpop.f32.mrf.mxu0
    %v151 = vadd.f32 %v131, %v150
    %152 = vdwg.mxu0
    %v153 = vmax.f32 %v151, 0.0
    %v154 = vld [vmem:[#allocation7] sm:$0xff]
    %v155 = vld [vmem:[#allocation7 + $0x8] sm:$0xff]
    %v156 = vld [vmem:[#allocation7 + $0x10] sm:$0xff]
    %v157 = vld [vmem:[#allocation7 + $0x18] sm:$0xff]
    %v158 = vld [vmem:[#allocation7 + $0x20] sm:$0xff]
    %v159 = vld [vmem:[#allocation7 + $0x28] sm:$0xff]
    %v160 = vld [vmem:[#allocation7 + $0x30] sm:$0xff]
    %v161 = vld [vmem:[#allocation7 + $0x38] sm:$0xff]
    %v162 = vld [vmem:[#allocation7 + $0x40] sm:$0xff]
    %v163 = vld [vmem:[#allocation7 + $0x48] sm:$0xff]
    %v164 = vld [vmem:[#allocation7 + $0x50] sm:$0xff]
    %v165 = vld [vmem:[#allocation7 + $0x58] sm:$0xff]
    %v166 = vld [vmem:[#allocation7 + $0x60] sm:$0xff]
    %v167 = vld [vmem:[#allocation7 + $0x68] sm:$0xff]
    %v168 = vld [vmem:[#allocation7 + $0x70] sm:$0xff]
    %v169 = vld [vmem:[#allocation7 + $0x78] sm:$0xff]
    %v170 = vld [vmem:[%s4] sm:$0x1]
    %v172 = vperm.slane %v170, 0
    %174 = vmatpush.msra.mxu0 %v169
    %175 = vmatpush.msra.mxu0 %v168
    %176 = vmatpush.msra.mxu0 %v167
    %177 = vmatpush.msra.mxu0 %v166
    %178 = vmatpush.msra.mxu0 %v165
    %179 = vmatpush.msra.mxu0 %v164
    %180 = vmatpush.msra.mxu0 %v163
    %181 = vmatpush.msra.mxu0 %v162
    %182 = vmatpush.msra.mxu0 %v161
    %183 = vmatpush.msra.mxu0 %v160
    %184 = vmatpush.msra.mxu0 %v159
    %185 = vmatpush.msra.mxu0 %v158
    %186 = vmatpush.msra.mxu0 %v157
    %187 = vmatpush.msra.mxu0 %v156
    %188 = vmatpush.msra.mxu0 %v155
    %189 = vmatpush.msra.mxu0 %v154
    %190 = vmatmul.f32.gmra.mxu0 %v153
    %v191 = vpop.f32.mrf.mxu0
    %v192 = vadd.f32 %v172, %v191
    %193 = vdwg.mxu0
    %v194 = vld [vmem:[#allocation8] sm:$0xff]
    %v195 = vld [vmem:[#allocation8 + $0x8] sm:$0xff]
    %v196 = vld [vmem:[#allocation8 + $0x10] sm:$0xff]
    %v197 = vld [vmem:[#allocation8 + $0x18] sm:$0xff]
    %v198 = vld [vmem:[#allocation8 + $0x20] sm:$0xff]
    %v199 = vld [vmem:[#allocation8 + $0x28] sm:$0xff]
    %v200 = vld [vmem:[#allocation8 + $0x30] sm:$0xff]
    %v201 = vld [vmem:[#allocation8 + $0x38] sm:$0xff]
    %v202 = vld [vmem:[#allocation8 + $0x40] sm:$0xff]
    %v203 = vld [vmem:[#allocation8 + $0x48] sm:$0xff]
    %v204 = vld [vmem:[#allocation8 + $0x50] sm:$0xff]
    %v205 = vld [vmem:[#allocation8 + $0x58] sm:$0xff]
    %v206 = vld [vmem:[#allocation8 + $0x60] sm:$0xff]
    %v207 = vld [vmem:[#allocation8 + $0x68] sm:$0xff]
    %v208 = vld [vmem:[#allocation8 + $0x70] sm:$0xff]
    %v209 = vld [vmem:[#allocation8 + $0x78] sm:$0xff]
    %v210 = vld [vmem:[%s6] sm:$0x1]
    %v212 = vperm.slane %v210, 0
    %214 = vmatpush.msra.mxu0 %v209
    %215 = vmatpush.msra.mxu0 %v208
    %216 = vmatpush.msra.mxu0 %v207
    %217 = vmatpush.msra.mxu0 %v206
    %218 = vmatpush.msra.mxu0 %v205
    %219 = vmatpush.msra.mxu0 %v204
    %220 = vmatpush.msra.mxu0 %v203
    %221 = vmatpush.msra.mxu0 %v202
    %222 = vmatpush.msra.mxu0 %v201
    %223 = vmatpush.msra.mxu0 %v200
    %224 = vmatpush.msra.mxu0 %v199
    %225 = vmatpush.msra.mxu0 %v198
    %226 = vmatpush.msra.mxu0 %v197
    %227 = vmatpush.msra.mxu0 %v196
    %228 = vmatpush.msra.mxu0 %v195
    %229 = vmatpush.msra.mxu0 %v194
    %230 = vmatmul.f32.gmra.mxu0 %v192
    %v231 = vpop.f32.mrf.mxu0
    %v232 = vadd.f32 %v212, %v231
    %233 = vdwg.mxu0
    %v234 = vmax.f32 %v232, 0.0
    %v235 = vld [vmem:[#allocation10] sm:$0xff]
    %v236 = vld [vmem:[#allocation10 + $0x8] sm:$0xff]
    %v237 = vld [vmem:[#allocation10 + $0x10] sm:$0xff]
    %v238 = vld [vmem:[#allocation10 + $0x18] sm:$0xff]
    %v239 = vld [vmem:[#allocation10 + $0x20] sm:$0xff]
    %v240 = vld [vmem:[#allocation10 + $0x28] sm:$0xff]
    %v241 = vld [vmem:[#allocation10 + $0x30] sm:$0xff]
    %v242 = vld [vmem:[#allocation10 + $0x38] sm:$0xff]
    %v243 = vld [vmem:[#allocation10 + $0x40] sm:$0xff]
    %v244 = vld [vmem:[#allocation10 + $0x48] sm:$0xff]
    %v245 = vld [vmem:[#allocation10 + $0x50] sm:$0xff]
    %v246 = vld [vmem:[#allocation10 + $0x58] sm:$0xff]
    %v247 = vld [vmem:[#allocation10 + $0x60] sm:$0xff]
    %v248 = vld [vmem:[#allocation10 + $0x68] sm:$0xff]
    %v249 = vld [vmem:[#allocation10 + $0x70] sm:$0xff]
    %v250 = vld [vmem:[#allocation10 + $0x78] sm:$0xff]
    %v251 = vld [vmem:[%s8] sm:$0x1]
    %v253 = vperm.slane %v251, 0
    %255 = vmatpush.msra.mxu0 %v250
    %256 = vmatpush.msra.mxu0 %v249
    %257 = vmatpush.msra.mxu0 %v248
    %258 = vmatpush.msra.mxu0 %v247
    %259 = vmatpush.msra.mxu0 %v246
    %260 = vmatpush.msra.mxu0 %v245
    %261 = vmatpush.msra.mxu0 %v244
    %262 = vmatpush.msra.mxu0 %v243
    %263 = vmatpush.msra.mxu0 %v242
    %264 = vmatpush.msra.mxu0 %v241
    %265 = vmatpush.msra.mxu0 %v240
    %266 = vmatpush.msra.mxu0 %v239
    %267 = vmatpush.msra.mxu0 %v238
    %268 = vmatpush.msra.mxu0 %v237
    %269 = vmatpush.msra.mxu0 %v236
    %270 = vmatpush.msra.mxu0 %v235
    %271 = vmatmul.f32.gmra.mxu0 %v234
    %v272 = vpop.f32.mrf.mxu0
    %v273 = vadd.f32 %v253, %v272
    %274 = vdwg.mxu0
    %275 = vst [vmem:[#allocation11] sm:$0xff] %v273
    %276 = vst [vmem:[#allocation12] sm:$0xff] %v192
    // Predicated region
    $region58: #{tpu_custom_call.1} parent=1 // pred_check
      _
    $region59: #{tpu_custom_call.1} parent=1 // pred_check_branch
      %278 = sbr.rel (0) target = $region61
    $region60: #{tpu_custom_call.1} parent=1 // pred_region
      %280 = vsyncadd [#allocation4], 0
      %s282 = sshll.u32 [#allocation11], 4
      %s283 = int_to_ptr.vmem [resolvable:$true] %s282
      %s284 = sshll.u32 %s9, 4
      %s285 = int_to_ptr.hbm [resolvable:$true] %s284
      %287 = dma.vmem_to_hbm [thread:$0]  %s283, 128, %s285, [#allocation4]
    $region61: #{tpu_custom_call.1} parent=1 // pred_fallthru
      _
    // Predicated region
    $region62: #{tpu_custom_call.1} parent=1 // pred_check
      _
    $region63: #{tpu_custom_call.1} parent=1 // pred_check_branch
      %289 = sbr.rel (0) target = $region65
    $region64: #{tpu_custom_call.1} parent=1 // pred_region
      %291 = vsyncadd [#allocation13], 0
      %s293 = sshll.u32 [#allocation12], 4
      %s294 = int_to_ptr.vmem [resolvable:$true] %s293
      %s295 = sshll.u32 %s10, 4
      %s296 = int_to_ptr.hbm [resolvable:$true] %s295
      %298 = dma.vmem_to_hbm [thread:$0]  %s294, 128, %s296, [#allocation13]
    $region65: #{tpu_custom_call.1} parent=1 // pred_fallthru
      _
    // Predicated region
    $region66: #{tpu_custom_call.1} parent=1 // pred_check
      _
    $region67: #{tpu_custom_call.1} parent=1 // pred_check_branch
      %300 = sbr.rel (0) target = $region69
    $region68: #{tpu_custom_call.1} parent=1 // pred_region
      %302 = dma.done [#allocation4], 128
    $region69: #{tpu_custom_call.1} parent=1 // pred_fallthru
      _
    // Predicated region
    $region70: #{tpu_custom_call.1} parent=1 // pred_check
      _
    $region71: #{tpu_custom_call.1} parent=1 // pred_check_branch
      %304 = sbr.rel (0) target = $region73
    $region72: #{tpu_custom_call.1} parent=1 // pred_region
      %306 = dma.done [#allocation13], 128
    $region73: #{tpu_custom_call.1} parent=1 // pred_fallthru
      _
    %307 = vsyncpa [#allocation3], 1
    %308 = vsyncpa [#allocation6], 1
    %309 = vsyncpa [#allocation9], 1
    %310 = vsyncpa [#allocation4], 1
    %311 = vsyncpa [#allocation13], 1

</llo_original>
